<compile_context>
chip_gen: v7x
topology: tpu7x:2x2x1
jax: 0.10.0
libtpu: 0.0.40
codegen_flags: <defaults>
</compile_context>

<pallas_src>
import functools

import jax
import jax.numpy as jnp
from jax.experimental import pallas as pl
from jax.experimental.pallas import tpu as pltpu

_LANES = 128
_CLAMP_LO = 1e-4
_CLAMP_HI = 1.0 - 1e-4


def _poly_hm_kernel(x_ref, t_ref, out_ref, acc_ref, *,
                    epsilon, scale, n_valid, block_rows, needs_mask):
    """One grid step = one (block_rows, 128) slab of the flattened heatmap.

    acc_ref is a VMEM f32 scratch of the same block shape; per-step work is
    pure elementwise VPU/EUP math plus one vector add into the accumulator.
    The cross-lane reduction + scaling happens only on the last step.
    """
    step = pl.program_id(0)

    @pl.when(step == 0)
    def _():
        acc_ref[...] = jnp.zeros_like(acc_ref)

    x = x_ref[...].astype(jnp.float32)
    t = t_ref[...].astype(jnp.float32)

    # _sigmoid(): clamped sigmoid.
    p = 1.0 / (1.0 + jnp.exp(-x))
    p = jnp.clip(p, _CLAMP_LO, _CLAMP_HI)

    # binary_cross_entropy(reduction='none')
    ce = -(t * jnp.log(p) + (1.0 - t) * jnp.log(1.0 - p))
    pt = jnp.where(t > 0.0, p, 1.0 - p)
    poly = ce + jnp.float32(epsilon) * (1.0 - pt)

    if needs_mask:
        # Zero out contributions from padded elements (only emitted when the
        # flattened size is not a multiple of the block).
        rows = jax.lax.broadcasted_iota(jnp.int32, poly.shape, 0)
        lanes = jax.lax.broadcasted_iota(jnp.int32, poly.shape, 1)
        flat = (step * block_rows + rows) * _LANES + lanes
        poly = jnp.where(flat < n_valid, poly, 0.0)

    acc_ref[...] += poly

    @pl.when(step == pl.num_programs(0) - 1)
    def _():
        out_ref[0, 0] = jnp.sum(acc_ref[...]) * jnp.float32(scale)


def _bce_mean_kernel(p_ref, y_ref, out_ref, *, scale):
    """Mean BCE on probabilities (PyTorch BCELoss clamps log at -100)."""
    p = p_ref[...].astype(jnp.float32)
    y = y_ref[...].astype(jnp.float32)
    log_p = jnp.maximum(jnp.log(p), -100.0)
    log_1mp = jnp.maximum(jnp.log(1.0 - p), -100.0)
    ce = -(y * log_p + (1.0 - y) * log_1mp)
    out_ref[0, 0] = jnp.sum(ce) * jnp.float32(scale)


def combined_poly_loss(hm_outputs, hm_targets, cls_preds, cls_gts, *,
                       use_target_weight=True, epsilon=2.0, cls_lmda=0.05,
                       reduction="mean", cls_cal=True):
    """hm_outputs: (B, C, H, W) logits (C == 1 in LAA-Net).
    hm_targets: (B, H, W) heatmap targets in [0, 1].
    cls_preds / cls_gts: classification probabilities / labels (e.g. (B, 1)).
    Returns {'hm': scalar, 'cls': scalar} like the PyTorch module."""
    del use_target_weight  # kept for API parity; unused by the reference forward.

    B, C, H, W = hm_outputs.shape
    n = B * C * H * W

    # Broadcast the target across the heatmap channel(s); with C == 1 this is
    # effectively a free reshape (no extra HBM traffic).
    t_full = jnp.broadcast_to(hm_targets[:, None, :, :], (B, C, H, W))

    x_flat = hm_outputs.reshape(-1)
    t_flat = t_full.astype(hm_targets.dtype).reshape(-1)

    rows_total = -(-n // _LANES)
    if rows_total <= 8:
        block_rows = rows_total                      # full-array block
    else:
        block_rows = max(8, min(2048, (rows_total // 8) * 8))
    grid_steps = -(-rows_total // block_rows)
    rows_pad = grid_steps * block_rows
    n_pad = rows_pad * _LANES
    needs_mask = (n_pad != n)
    if needs_mask:
        x_flat = jnp.pad(x_flat, (0, n_pad - n))
        t_flat = jnp.pad(t_flat, (0, n_pad - n))
    x2d = x_flat.reshape(rows_pad, _LANES)
    t2d = t_flat.reshape(rows_pad, _LANES)

    scale = (1.0 / float(H * W) / float(B)) if reduction == "mean" else 1.0

    hm_out = pl.pallas_call(
        functools.partial(_poly_hm_kernel, epsilon=float(epsilon), scale=scale,
                          n_valid=n, block_rows=block_rows,
                          needs_mask=needs_mask),
        out_shape=jax.ShapeDtypeStruct((1, 1), jnp.float32),
        grid_spec=pltpu.PrefetchScalarGridSpec(
            num_scalar_prefetch=0,
            grid=(grid_steps,),
            in_specs=[
                pl.BlockSpec((block_rows, _LANES), lambda i: (i, 0)),
                pl.BlockSpec((block_rows, _LANES), lambda i: (i, 0)),
            ],
            out_specs=pl.BlockSpec(memory_space=pltpu.MemorySpace.SMEM),
            scratch_shapes=[pltpu.VMEM((block_rows, _LANES), jnp.float32)],
        ),
        compiler_params=pltpu.CompilerParams(
            dimension_semantics=("arbitrary",)),
    )(x2d, t2d)
    hm_loss = hm_out[0, 0]

    # --- classification BCE (tiny; single full-array block) ---
    p2d = cls_preds.reshape(cls_preds.shape[0], -1)
    y2d = cls_gts.reshape(p2d.shape)
    n_cls = p2d.shape[0] * p2d.shape[1]
    cls_out = pl.pallas_call(
        functools.partial(_bce_mean_kernel, scale=1.0 / float(n_cls)),
        out_shape=jax.ShapeDtypeStruct((1, 1), jnp.float32),
        grid_spec=pltpu.PrefetchScalarGridSpec(
            num_scalar_prefetch=0,
            grid=(1,),
            in_specs=[
                pl.BlockSpec(p2d.shape, lambda i: (0, 0)),
                pl.BlockSpec(p2d.shape, lambda i: (0, 0)),
            ],
            out_specs=pl.BlockSpec(memory_space=pltpu.MemorySpace.SMEM),
        ),
        compiler_params=pltpu.CompilerParams(
            dimension_semantics=("arbitrary",)),
    )(p2d, y2d)
    lmda = float(cls_lmda) if cls_cal else 0.0
    cls_loss = cls_out[0, 0] * jnp.float32(lmda)

    return {"hm": hm_loss, "cls": cls_loss}


def _reference_combined_poly_loss(hm_outputs, hm_targets, cls_preds, cls_gts, *,
                                  epsilon=2.0, cls_lmda=0.05, reduction="mean",
                                  cls_cal=True):
    """Pure-JAX reference mirroring the PyTorch double loop (vectorized)."""
    B, C, H, W = hm_outputs.shape
    x = hm_outputs.astype(jnp.float32)
    p = jnp.clip(1.0 / (1.0 + jnp.exp(-x)), _CLAMP_LO, _CLAMP_HI)
    t = hm_targets.astype(jnp.float32)[:, None, :, :]
    ce = -(t * jnp.log(p) + (1.0 - t) * jnp.log(1.0 - p))
    pt = jnp.where(t > 0.0, p, 1.0 - p)
    poly = ce + epsilon * (1.0 - pt)
    s = jnp.sum(poly)
    hm_loss = s / (H * W) / B if reduction == "mean" else s

    cp = cls_preds.astype(jnp.float32)
    cy = cls_gts.astype(jnp.float32).reshape(cp.shape)
    log_p = jnp.maximum(jnp.log(cp), -100.0)
    log_1mp = jnp.maximum(jnp.log(1.0 - cp), -100.0)
    bce = jnp.mean(-(cy * log_p + (1.0 - cy) * log_1mp))
    lmda = cls_lmda if cls_cal else 0.0
    return {"hm": hm_loss, "cls": bce * lmda}


if __name__ == "__main__":
    B, C, H, W = 2, 1, 16, 16
    key = jax.random.PRNGKey(0)
    k1, k2, k3, k4 = jax.random.split(key, 4)

    hm_outputs = jax.random.normal(k1, (B, C, H, W), dtype=jnp.float32)
    u = jax.random.uniform(k2, (B, H, W), dtype=jnp.float32)
    hm_targets = jnp.where(u > 0.7, u, 0.0)  # sparse, heatmap-like targets
    cls_preds = jax.random.uniform(k3, (B, 1), minval=0.05, maxval=0.95,
                                   dtype=jnp.float32)
    cls_gts = (jax.random.uniform(k4, (B, 1)) > 0.5).astype(jnp.float32)

    losses = combined_poly_loss(hm_outputs, hm_targets, cls_preds, cls_gts)
    losses = jax.block_until_ready(losses)

    ref = _reference_combined_poly_loss(hm_outputs, hm_targets, cls_preds,
                                        cls_gts)
    assert jnp.allclose(losses["hm"], ref["hm"], rtol=1e-5, atol=1e-6), \
        (losses["hm"], ref["hm"])
    assert jnp.allclose(losses["cls"], ref["cls"], rtol=1e-5, atol=1e-6), \
        (losses["cls"], ref["cls"])

    # Also exercise cls_cal=False (cls term zeroed) and reduction='sum'.
    losses2 = combined_poly_loss(hm_outputs, hm_targets, cls_preds, cls_gts,
                                 cls_cal=False, reduction="sum")
    losses2 = jax.block_until_ready(losses2)
    ref2 = _reference_combined_poly_loss(hm_outputs, hm_targets, cls_preds,
                                         cls_gts, cls_cal=False,
                                         reduction="sum")
    assert jnp.allclose(losses2["hm"], ref2["hm"], rtol=1e-5, atol=1e-5), \
        (losses2["hm"], ref2["hm"])
    assert jnp.allclose(losses2["cls"], ref2["cls"], rtol=1e-5, atol=1e-6), \
        (losses2["cls"], ref2["cls"])

    print("KERNEL_OK")
</pallas_src>

<mosaic_0001>
module attributes {stable_mosaic.version = 11 : i64} {
  func.func @_poly_hm_kernel(%arg0: i32, %arg1: memref<4x128xf32, #tpu.memory_space<vmem>>, %arg2: memref<4x128xf32, #tpu.memory_space<vmem>>, %arg3: memref<1x1xf32, #tpu.memory_space<smem>>, %arg4: memref<4x128xf32, #tpu.memory_space<vmem>>) attributes {dimension_semantics = [#tpu.dimension_semantics<arbitrary>], iteration_bounds = array<i64: 1>, scalar_prefetch = 0 : i64, scratch_operands = 1 : i64, tpu.core_type = #tpu.core_type<tc>, window_params = [{transform_indices = @transform_0, window_bounds = array<i64: 4, 128>}, {transform_indices = @transform_1, window_bounds = array<i64: 4, 128>}, {transform_indices = @transform_2, window_bounds = array<i64: 1, 1>}]} {
    %c0_i32 = arith.constant 0 : i32
    %0 = arith.cmpi eq, %arg0, %c0_i32 : i32
    %1 = arith.extui %0 : i1 to i32
    %c0_i32_0 = arith.constant 0 : i32
    %2 = arith.cmpi ne, %1, %c0_i32_0 : i32
    scf.if %2 {
      %cst_21 = arith.constant 0.000000e+00 : f32
      %43 = vector.broadcast %cst_21 : f32 to vector<4x128xf32>
      %c0_22 = arith.constant 0 : index
      %c0_23 = arith.constant 0 : index
      %44 = vector.load %arg4[%c0_22, %c0_23] : memref<4x128xf32, #tpu.memory_space<vmem>>, vector<4x128xf32>
      tpu.vector_store %arg4[%c0_22, %c0_23], %43 {strides = array<i32>} : memref<4x128xf32, #tpu.memory_space<vmem>>, vector<4x128xf32>,
    } else {
    }
    %c0 = arith.constant 0 : index
    %c0_1 = arith.constant 0 : index
    %3 = vector.load %arg1[%c0, %c0_1] : memref<4x128xf32, #tpu.memory_space<vmem>>, vector<4x128xf32>
    %c0_2 = arith.constant 0 : index
    %c0_3 = arith.constant 0 : index
    %4 = vector.load %arg2[%c0_2, %c0_3] : memref<4x128xf32, #tpu.memory_space<vmem>>, vector<4x128xf32>
    %cst = arith.constant 0.000000e+00 : f32
    %5 = vector.broadcast %cst : f32 to vector<4x128xf32>
    %6 = arith.subf %5, %3 : vector<4x128xf32>
    %7 = math.exp %6 : vector<4x128xf32>
    %cst_4 = arith.constant 1.000000e+00 : f32
    %8 = vector.broadcast %cst_4 : f32 to vector<4x128xf32>
    %9 = arith.addf %8, %7 : vector<4x128xf32>
    %cst_5 = arith.constant 1.000000e+00 : f32
    %10 = vector.broadcast %cst_5 : f32 to vector<4x128xf32>
    %11 = arith.divf %10, %9 : vector<4x128xf32>
    %cst_6 = arith.constant 9.99999974E-5 : f32
    %cst_7 = arith.constant 0.999899983 : f32
    %12 = vector.broadcast %cst_6 : f32 to vector<4x128xf32>
    %13 = arith.maximumf %12, %11 : vector<4x128xf32>
    %14 = vector.broadcast %cst_7 : f32 to vector<4x128xf32>
    %15 = arith.minimumf %14, %13 : vector<4x128xf32>
    %16 = math.log %15 : vector<4x128xf32>
    %17 = arith.mulf %4, %16 : vector<4x128xf32>
    %cst_8 = arith.constant 1.000000e+00 : f32
    %18 = vector.broadcast %cst_8 : f32 to vector<4x128xf32>
    %19 = arith.subf %18, %4 : vector<4x128xf32>
    %cst_9 = arith.constant 1.000000e+00 : f32
    %20 = vector.broadcast %cst_9 : f32 to vector<4x128xf32>
    %21 = arith.subf %20, %15 : vector<4x128xf32>
    %22 = math.log %21 : vector<4x128xf32>
    %23 = arith.mulf %19, %22 : vector<4x128xf32>
    %24 = arith.addf %17, %23 : vector<4x128xf32>
    %cst_10 = arith.constant 0.000000e+00 : f32
    %25 = vector.broadcast %cst_10 : f32 to vector<4x128xf32>
    %26 = arith.subf %25, %24 : vector<4x128xf32>
    %cst_11 = arith.constant 0.000000e+00 : f32
    %27 = vector.broadcast %cst_11 : f32 to vector<4x128xf32>
    %28 = arith.cmpf ogt, %4, %27 : vector<4x128xf32>
    %cst_12 = arith.constant 1.000000e+00 : f32
    %29 = vector.broadcast %cst_12 : f32 to vector<4x128xf32>
    %30 = arith.subf %29, %15 : vector<4x128xf32>
    %31 = arith.select %28, %15, %30 : vector<4x128xi1>, vector<4x128xf32>
    %cst_13 = arith.constant 1.000000e+00 : f32
    %32 = vector.broadcast %cst_13 : f32 to vector<4x128xf32>
    %33 = arith.subf %32, %31 : vector<4x128xf32>
    %cst_14 = arith.constant 2.000000e+00 : f32
    %34 = vector.broadcast %cst_14 : f32 to vector<4x128xf32>
    %35 = arith.mulf %34, %33 : vector<4x128xf32>
    %36 = arith.addf %26, %35 : vector<4x128xf32>
    %c0_15 = arith.constant 0 : index
    %c0_16 = arith.constant 0 : index
    %37 = vector.load %arg4[%c0_15, %c0_16] : memref<4x128xf32, #tpu.memory_space<vmem>>, vector<4x128xf32>
    %38 = arith.addf %37, %36 : vector<4x128xf32>
    %c0_17 = arith.constant 0 : index
    %c0_18 = arith.constant 0 : index
    %39 = vector.load %arg4[%c0_17, %c0_18] : memref<4x128xf32, #tpu.memory_space<vmem>>, vector<4x128xf32>
    tpu.vector_store %arg4[%c0_17, %c0_18], %38 {strides = array<i32>} : memref<4x128xf32, #tpu.memory_space<vmem>>, vector<4x128xf32>,
    %c0_i32_19 = arith.constant 0 : i32
    %40 = arith.cmpi eq, %arg0, %c0_i32_19 : i32
    %41 = arith.extui %40 : i1 to i32
    %c0_i32_20 = arith.constant 0 : i32
    %42 = arith.cmpi ne, %41, %c0_i32_20 : i32
    scf.if %42 {
      %c0_21 = arith.constant 0 : index
      %c0_22 = arith.constant 0 : index
      %43 = vector.load %arg4[%c0_21, %c0_22] : memref<4x128xf32, #tpu.memory_space<vmem>>, vector<4x128xf32>
      %44 = vector.shape_cast %43 : vector<4x128xf32> to vector<1x4x128xf32>
      %cst_23 = arith.constant dense<0.000000e+00> : vector<1xf32>
      %45 = vector.multi_reduction <add>, %44, %cst_23 [1, 2] : vector<1x4x128xf32> to vector<1xf32>
      %46 = vector.shape_cast %45 : vector<1xf32> to vector<1x1x1xf32>
      %47 = vector.extract %46[0, 0, 0] : f32 from vector<1x1x1xf32>
      %cst_24 = arith.constant 0.001953125 : f32
      %48 = arith.mulf %47, %cst_24 : f32
      %c0_25 = arith.constant 0 : index
      %c0_26 = arith.constant 0 : index
      %49 = memref.load %arg3[%c0_25, %c0_26] : memref<1x1xf32, #tpu.memory_space<smem>>
      memref.store %48, %arg3[%c0_25, %c0_26] : memref<1x1xf32, #tpu.memory_space<smem>>
    } else {
    }
    return
  }
  func.func @transform_0(%arg0: i32) -> (i32, i32) {
    %c0_i32 = arith.constant 0 : i32
    %c0_i32_0 = arith.constant 0 : i32
    return %arg0, %c0_i32 : i32, i32
  }
  func.func @transform_1(%arg0: i32) -> (i32, i32) {
    %c0_i32 = arith.constant 0 : i32
    %c0_i32_0 = arith.constant 0 : i32
    return %arg0, %c0_i32 : i32, i32
  }
  func.func @transform_2(%arg0: i32) -> (i32, i32) {
    %c0_i32 = arith.constant 0 : i32
    %c0_i32_0 = arith.constant 0 : i32
    %c0_i32_1 = arith.constant 0 : i32
    return %c0_i32, %c0_i32_0 : i32, i32
  }
}

</mosaic_0001>

<llo_original>
// kernel: tpu_custom_call.1
$region0: #{tpu_custom_call.1}
  #allocation0 [shape = 'u32[]', space=smem, size = 0x4, offset = 0x4, fixed_abs, tag = 'smem constant byte address 0x4 - core index']
  #allocation1 [shape = 'u32[144,128]{1,0:T(1,128)}', space=vmem, size = 0x12000, scoped, tag = 'internal scratch']
  #allocation2 [shape = 'f32[4,128]{1,0:T(4,128)}', space=vmem, size = 0x800, scoped, tag = 'scratch operand']
  %s0 = inlined_call_operand.hbm [shape: f32[4,128], index: 0, kind: input, shape index: {}]
  %s1 = inlined_call_operand.hbm [shape: f32[4,128], index: 1, kind: input, shape index: {}]
  %s2 = inlined_call_operand.hbm [shape: f32[1,1], index: 2, kind: output, shape index: {}]
  %s3 = sld [smem:[#allocation0]]
  $region34: #{tpu_custom_call.1} parent=0
    _
  %s5 = ssub.s32 1, %s3
  %s6 = scalar_select 0, %s5, %s3
  $region1: #{tpu_custom_call.1} parent=0
    #allocation3 [shape = 'u8[2048]{0}', space=vmem, size = 0x800, scoped, tag = 'input window, operand 0, single buffered']
    #allocation4 [shape = 's32[1]{0}', space=sflag, size = 0x4, scoped, tag = 'scoped memory for tpu_custom_call.1']
    #allocation5 [shape = 's32[1]{0}', space=sflag, size = 0x4, scoped, tag = 'scoped memory for tpu_custom_call.1']
    #allocation6 [shape = 'u8[2048]{0}', space=vmem, size = 0x800, scoped, tag = 'input window, operand 1, single buffered']
    #allocation7 [shape = 's32[1]{0}', space=sflag, size = 0x4, scoped, tag = 'scoped memory for tpu_custom_call.1']
    #allocation8 [shape = 'u8[512]{0}', space=smem, size = 0x200, scoped, tag = 'output window, operand 0, single buffered']
    %7 = vsyncpa [#allocation4], 0
    %8 = vsyncpa [#allocation7], 0
    %9 = vsyncpa [#allocation5], 0
    // Predicated region
    $region2: #{tpu_custom_call.1} parent=1 // pred_check
      _
    $region3: #{tpu_custom_call.1} parent=1 // pred_check_branch
      %11 = sbr.rel (0) target = $region5
    $region4: #{tpu_custom_call.1} parent=1 // pred_region
      %s13 = ssub.s32 64, 64
      %14 = vsyncadd [#allocation4], %s13
      %s16 = sshll.u32 [#allocation3], 4
      %s17 = int_to_ptr.vmem [resolvable:$true] %s16
      %19 = dma.hbm_to_vmem [thread:$0]  %s0, 64, %s17, [#allocation4]
    $region5: #{tpu_custom_call.1} parent=1 // pred_fallthru
      _
    // Predicated region
    $region6: #{tpu_custom_call.1} parent=1 // pred_check
      _
    $region7: #{tpu_custom_call.1} parent=1 // pred_check_branch
      %21 = sbr.rel (0) target = $region9
    $region8: #{tpu_custom_call.1} parent=1 // pred_region
      %s23 = ssub.s32 64, 64
      %24 = vsyncadd [#allocation7], %s23
      %s26 = sshll.u32 [#allocation6], 4
      %s27 = int_to_ptr.vmem [resolvable:$true] %s26
      %29 = dma.hbm_to_vmem [thread:$0]  %s1, 64, %s27, [#allocation7]
    $region9: #{tpu_custom_call.1} parent=1 // pred_fallthru
      _
    // Predicated region
    $region10: #{tpu_custom_call.1} parent=1 // pred_check
      _
    $region11: #{tpu_custom_call.1} parent=1 // pred_check_branch
      %31 = sbr.rel (0) target = $region13
    $region12: #{tpu_custom_call.1} parent=1 // pred_region
      %32 = dma.done [#allocation4], 64
    $region13: #{tpu_custom_call.1} parent=1 // pred_fallthru
      _
    // Predicated region
    $region14: #{tpu_custom_call.1} parent=1 // pred_check
      _
    $region15: #{tpu_custom_call.1} parent=1 // pred_check_branch
      %34 = sbr.rel (0) target = $region17
    $region16: #{tpu_custom_call.1} parent=1 // pred_region
      %35 = dma.done [#allocation7], 64
    $region17: #{tpu_custom_call.1} parent=1 // pred_fallthru
      _
    %p36 = scmp.eq.s32.totalorder 0, 0
    // Predicated region
    $region18: #{tpu_custom_call.1} parent=1 // pred_check
      %p37 = pneg %p36
    $region19: #{tpu_custom_call.1} parent=1 // pred_check_branch
      %39 = sbr.rel (%p37) target = $region21
    $region20: #{tpu_custom_call.1} parent=1 // pred_region
      %40 = vst [vmem:[#allocation2] sm:$0xf] 0.0
    $region21: #{tpu_custom_call.1} parent=1 // pred_fallthru
      _
    %v41 = vld [vmem:[#allocation3] sm:$0xf]
    %v42 = vld [vmem:[#allocation6] sm:$0xf]
    %v43 = vsub.f32 0.0, %v41
    %v44 = vmul.f32 %v43, 1.442695
    %v45 = vpow.pop %v44
    %v46 = vadd.f32 %v45, 1.0
    %v47 = vrcp.pop %v46
    %v48 = vmul.f32 1.0, %v47
    %v49 = vmax.f32 %v48, 0.0001
    %v50 = vmin.f32 %v49, 0.9999
    %v51 = vlog2.pop %v50
    %v52 = vmul.f32 %v51, 0.6931472
    %v53 = vmul.f32 %v42, %v52
    %v54 = vsub.f32 1.0, %v42
    %v55 = vsub.f32 1.0, %v50
    %v56 = vlog2.pop %v55
    %v57 = vmul.f32 %v56, 0.6931472
    %v58 = vmul.f32 %v54, %v57
    %v59 = vadd.f32 %v53, %v58
    %v60 = vsub.f32 0.0, %v59
    %vm61 = vcmp.gt.f32.partialorder %v42, 0.0
    %v62 = vsel %vm61, %v50, %v55
    %v63 = vsub.f32 1.0, %v62
    %v64 = vmul.f32 %v63, 2.0
    %v65 = vadd.f32 %v60, %v64
    %v66 = vld [vmem:[#allocation2] sm:$0xf]
    %v67 = vadd.f32 %v66, %v65
    %68 = vst [vmem:[#allocation2] sm:$0xf] %v67
    // Predicated region
    $region22: #{tpu_custom_call.1} parent=1 // pred_check
      %p69 = pneg %p36
    $region23: #{tpu_custom_call.1} parent=1 // pred_check_branch
      %71 = sbr.rel (%p69) target = $region25
    $region24: #{tpu_custom_call.1} parent=1 // pred_region
      %v72 = vld [vmem:[#allocation2] sm:$0xf]
      %vm73 = vcmask 1043456
      %v74 = vsel %vm73, %v72, 0.0
      %75 = vadd.xlane.f32.xlu0 %v74
      %v76 = vpop.xlane.xlu0 %75
      %v77 = vrot.slane %v76, 4
      %v78 = vadd.f32 %v76, %v77
      %v79 = vrot.slane %v78, 2
      %v80 = vadd.f32 %v78, %v79
      %v81 = vrot.slane %v80, 1
      %v82 = vadd.f32 %v80, %v81
      %s83 = vtos %v82
      %s84 = smul.f32 %s83, 0.001953125
      %s85 = scalar_lea.smem [#allocation8], 0
      %86 = sst [smem:[%s85]] %s84
    $region25: #{tpu_custom_call.1} parent=1 // pred_fallthru
      _
    // Predicated region
    $region26: #{tpu_custom_call.1} parent=1 // pred_check
      _
    $region27: #{tpu_custom_call.1} parent=1 // pred_check_branch
      %88 = sbr.rel (0) target = $region29
    $region28: #{tpu_custom_call.1} parent=1 // pred_region
      %s90 = ssub.s32 16, 16
      %91 = vsyncadd [#allocation5], %s90
      %94 = dma.smem_to_hbm [#allocation8], 16, %s2, [#allocation5]
    $region29: #{tpu_custom_call.1} parent=1 // pred_fallthru
      _
    // Predicated region
    $region30: #{tpu_custom_call.1} parent=1 // pred_check
      _
    $region31: #{tpu_custom_call.1} parent=1 // pred_check_branch
      %96 = sbr.rel (0) target = $region33
    $region32: #{tpu_custom_call.1} parent=1 // pred_region
      %97 = dma.done [#allocation5], 16
    $region33: #{tpu_custom_call.1} parent=1 // pred_fallthru
      _
    %98 = sfence
    %99 = vsyncpa [#allocation4], 1
    %100 = vsyncpa [#allocation7], 1
    %101 = vsyncpa [#allocation5], 1

</llo_original>
